<compile_context>
chip_gen: v6e
topology: v6e:2x2x1
jax: 0.10.0
libtpu: 0.0.40
codegen_flags: <defaults>
</compile_context>

<pallas_src>
import jax
import jax.numpy as jnp
from jax.experimental import pallas as pl
from jax.experimental.pallas import tpu as pltpu


def _wsm_kernel(feats_ref, w_ref, b_ref, hg_ref, aw_ref):
    # feats_ref : (TB, N, F)  node features for TB graphs
    # w_ref     : (1, F)      atom_weighting Linear weight (torch layout (1, F))
    # b_ref     : (1, 1)      Linear bias, resident in SMEM
    # hg_ref    : (TB, 2F)    [weighted-sum | max] over nodes per graph
    # aw_ref    : (TB, N)     pre-sigmoid atom-weight logits
    x = feats_ref[...].astype(jnp.float32)            # f32 accumulation
    w_row = w_ref[...].astype(jnp.float32)            # (1, F)
    bias = b_ref[0, 0]                                 # scalar from SMEM

    # Linear(in_feats, 1): VPU multiply + XLU lane reduce (no width-1 MXU pass).
    # keepdims keeps the (TB, N, 1) layout so the gate broadcasts back against
    # x without a second relayout.
    logits = jnp.sum(x * w_row, axis=-1, keepdims=True) + bias   # (TB, N, 1)
    gate = jax.nn.sigmoid(logits)                                # (TB, N, 1)

    h_sum = jnp.sum(gate * x, axis=1)                 # (TB, F)
    h_max = jnp.max(x, axis=1)                        # (TB, F)

    # Single lane-dense (TB, 2F) store instead of two (TB, F) outputs + a
    # wrapper concatenate.
    hg_ref[...] = jnp.concatenate([h_sum, h_max], axis=-1).astype(hg_ref.dtype)
    aw_ref[...] = logits[..., 0].astype(aw_ref.dtype)


def weighted_sum_and_max(feats, weight, bias, get_node_weight=False):
    """WeightedSumAndMax forward.

    feats : [B, N, F] float; weight: [1, F] (torch nn.Linear(F, 1).weight);
    bias  : [1, 1].
    """
    B, N, F = feats.shape
    itemsize = jnp.dtype(feats.dtype).itemsize

    # --- Tile-size selection (VMEM budget aware) -----------------------------
    # Per-graph double-buffered VMEM bytes: feats block in + (h_g, atom_w) out.
    per_graph = 2 * (N * F + 2 * F + N) * itemsize
    budget = 40 * 1024 * 1024          # conservative: fits v7x's 64 MiB physical
    tb = int(budget // max(per_graph, 1))
    tb = max(8, min(tb, 2048))
    tb = (tb // 8) * 8                 # (8, ...) sublane rule for (tb, *) outputs
    if tb >= B:
        if B >= 16:
            # Keep >= 2 grid steps so both v7x TensorCores get fed.
            tb = max(8, ((B // 2) // 8) * 8)
        else:
            tb = B                     # single full-extent block (no (8,128) issue)
    num_tiles = pl.cdiv(B, tb)         # final partial block handled by Pallas

    footprint = per_graph * tb + 4 * F * itemsize + (2 << 20)
    vmem_limit = int(min(48 * 1024 * 1024, max(footprint, 16 * 1024 * 1024)))

    cost = pl.CostEstimate(
        flops=5 * B * N * F,                                   # logits + gated sum + max
        transcendentals=B * N,                                 # sigmoid
        bytes_accessed=(B * N * F + B * (2 * F + N)) * itemsize,
    )

    h_g, atom_w = pl.pallas_call(
        _wsm_kernel,
        out_shape=(
            jax.ShapeDtypeStruct((B, 2 * F), feats.dtype),
            jax.ShapeDtypeStruct((B, N), feats.dtype),
        ),
        grid_spec=pltpu.PrefetchScalarGridSpec(
            num_scalar_prefetch=0,
            grid=(num_tiles,),
            in_specs=[
                pl.BlockSpec((tb, N, F), lambda t: (t, 0, 0)),
                pl.BlockSpec((1, F), lambda t: (0, 0)),
                pl.BlockSpec(memory_space=pltpu.MemorySpace.SMEM),
            ],
            out_specs=[
                pl.BlockSpec((tb, 2 * F), lambda t: (t, 0)),
                pl.BlockSpec((tb, N), lambda t: (t, 0)),
            ],
        ),
        compiler_params=pltpu.CompilerParams(
            dimension_semantics=("parallel",),
            vmem_limit_bytes=vmem_limit,
        ),
        cost_estimate=cost,
    )(feats, weight, bias)

    if get_node_weight:
        return h_g, atom_w.reshape(B, N, 1)
    return h_g


def _reference(feats, weight, bias):
    # Pure-JAX reference matching the PyTorch/DGL semantics of the module.
    f32 = feats.astype(jnp.float32)
    logits = jnp.einsum("bnf,of->bno", f32, weight.astype(jnp.float32)) + bias[0, 0]
    w = jax.nn.sigmoid(logits)
    h_sum = jnp.sum(w * f32, axis=1)            # [B, F]
    h_max = jnp.max(f32, axis=1)                # [B, F]
    return jnp.concatenate([h_sum, h_max], axis=1), logits


if __name__ == "__main__":
    B, N, F = 2, 8, 32  # 2 graphs, 8 nodes each, in_feats = 32

    key = jax.random.PRNGKey(0)
    k_feats, k_w = jax.random.split(key)
    feats = jax.random.normal(k_feats, (B, N, F), dtype=jnp.float32)

    # nn.Linear(in_feats, 1): torch weight shape is (1, F); bias is a scalar.
    weight = jax.random.normal(k_w, (1, F), dtype=jnp.float32) * 0.1
    bias = jnp.full((1, 1), 0.05, dtype=jnp.float32)

    h_g, atom_w = weighted_sum_and_max(feats, weight, bias, get_node_weight=True)
    jax.block_until_ready((h_g, atom_w))

    ref_hg, ref_aw = _reference(feats, weight, bias)
    assert h_g.shape == (B, 2 * F)
    assert atom_w.shape == (B, N, 1)
    assert jnp.allclose(h_g, ref_hg, atol=1e-5, rtol=1e-5)
    assert jnp.allclose(atom_w, ref_aw, atol=1e-5, rtol=1e-5)

    # Also exercise a batch size that does not divide the tile (partial block path).
    B2 = 37
    feats2 = jax.random.normal(jax.random.PRNGKey(1), (B2, N, F), dtype=jnp.float32)
    h_g2 = weighted_sum_and_max(feats2, weight, bias)
    jax.block_until_ready(h_g2)
    ref_hg2, _ = _reference(feats2, weight, bias)
    assert h_g2.shape == (B2, 2 * F)
    assert jnp.allclose(h_g2, ref_hg2, atol=1e-5, rtol=1e-5)

    print("KERNEL_OK")
</pallas_src>

<mosaic_0001>
module attributes {stable_mosaic.version = 11 : i64} {
  func.func @_wsm_kernel(%arg0: i32, %arg1: memref<2x8x32xf32, #tpu.memory_space<vmem>>, %arg2: memref<1x32xf32, #tpu.memory_space<vmem>>, %arg3: memref<1x1xf32, #tpu.memory_space<smem>>, %arg4: memref<2x64xf32, #tpu.memory_space<vmem>>, %arg5: memref<2x8xf32, #tpu.memory_space<vmem>>) attributes {dimension_semantics = [#tpu.dimension_semantics<parallel>], iteration_bounds = array<i64: 1>, scalar_prefetch = 0 : i64, scratch_operands = 0 : i64, tpu.core_type = #tpu.core_type<tc>, window_params = [{transform_indices = @transform_0, window_bounds = array<i64: 2, 8, 32>}, {pipeline_mode = #tpu.pipeline_mode<synchronous>, transform_indices = @transform_1, window_bounds = array<i64: 1, 32>}, {transform_indices = @transform_2, window_bounds = array<i64: 1, 1>}, {transform_indices = @transform_3, window_bounds = array<i64: 2, 64>}, {transform_indices = @transform_4, window_bounds = array<i64: 2, 8>}]} {
    %c0 = arith.constant 0 : index
    %c0_0 = arith.constant 0 : index
    %c0_1 = arith.constant 0 : index
    %0 = vector.load %arg1[%c0, %c0_0, %c0_1] : memref<2x8x32xf32, #tpu.memory_space<vmem>>, vector<2x8x32xf32>
    %c0_2 = arith.constant 0 : index
    %c0_3 = arith.constant 0 : index
    %1 = vector.load %arg2[%c0_2, %c0_3] : memref<1x32xf32, #tpu.memory_space<vmem>>, vector<1x32xf32>
    %c0_4 = arith.constant 0 : index
    %c0_5 = arith.constant 0 : index
    %2 = memref.load %arg3[%c0_4, %c0_5] : memref<1x1xf32, #tpu.memory_space<smem>>
    %3 = vector.shape_cast %1 : vector<1x32xf32> to vector<1x1x32xf32>
    %4 = vector.broadcast %3 : vector<1x1x32xf32> to vector<2x8x32xf32>
    %5 = arith.mulf %0, %4 : vector<2x8x32xf32>
    %cst = arith.constant dense<0.000000e+00> : vector<2x8xf32>
    %6 = vector.multi_reduction <add>, %5, %cst [2] : vector<2x8x32xf32> to vector<2x8xf32>
    %7 = vector.shape_cast %6 : vector<2x8xf32> to vector<2x8x1xf32>
    %8 = vector.broadcast %2 : f32 to vector<2x8x1xf32>
    %9 = arith.addf %7, %8 : vector<2x8x1xf32>
    %10 = arith.negf %9 : vector<2x8x1xf32>
    %11 = math.exp %10 : vector<2x8x1xf32>
    %cst_6 = arith.constant 1.000000e+00 : f32
    %12 = vector.broadcast %cst_6 : f32 to vector<2x8x1xf32>
    %13 = arith.addf %12, %11 : vector<2x8x1xf32>
    %14 = arith.divf %12, %13 : vector<2x8x1xf32>
    %15 = vector.broadcast %14 : vector<2x8x1xf32> to vector<2x8x32xf32>
    %16 = arith.mulf %15, %0 : vector<2x8x32xf32>
    %cst_7 = arith.constant dense<0.000000e+00> : vector<2x32xf32>
    %17 = vector.multi_reduction <add>, %16, %cst_7 [1] : vector<2x8x32xf32> to vector<2x32xf32>
    %cst_8 = arith.constant dense<0xFF800000> : vector<2x32xf32>
    %18 = vector.multi_reduction <maximumf>, %0, %cst_8 [1] : vector<2x8x32xf32> to vector<2x32xf32>
    %19 = tpu.concatenate %17, %18 in 1 : vector<2x32xf32>, vector<2x32xf32> -> vector<2x64xf32>
    %c0_9 = arith.constant 0 : index
    %c0_10 = arith.constant 0 : index
    %20 = vector.load %arg4[%c0_9, %c0_10] : memref<2x64xf32, #tpu.memory_space<vmem>>, vector<2x64xf32>
    tpu.vector_store %arg4[%c0_9, %c0_10], %19 {strides = array<i32>} : memref<2x64xf32, #tpu.memory_space<vmem>>, vector<2x64xf32>,
    %21 = vector.shape_cast %9 : vector<2x8x1xf32> to vector<2x8xf32>
    %c0_11 = arith.constant 0 : index
    %c0_12 = arith.constant 0 : index
    %22 = vector.load %arg5[%c0_11, %c0_12] : memref<2x8xf32, #tpu.memory_space<vmem>>, vector<2x8xf32>
    tpu.vector_store %arg5[%c0_11, %c0_12], %21 {strides = array<i32>} : memref<2x8xf32, #tpu.memory_space<vmem>>, vector<2x8xf32>,
    return
  }
  func.func @transform_0(%arg0: i32) -> (i32, i32, i32) {
    %c0_i32 = arith.constant 0 : i32
    %c0_i32_0 = arith.constant 0 : i32
    %c0_i32_1 = arith.constant 0 : i32
    return %arg0, %c0_i32, %c0_i32_0 : i32, i32, i32
  }
  func.func @transform_1(%arg0: i32) -> (i32, i32) {
    %c0_i32 = arith.constant 0 : i32
    %c0_i32_0 = arith.constant 0 : i32
    %c0_i32_1 = arith.constant 0 : i32
    return %c0_i32, %c0_i32_0 : i32, i32
  }
  func.func @transform_2(%arg0: i32) -> (i32, i32) {
    %c0_i32 = arith.constant 0 : i32
    %c0_i32_0 = arith.constant 0 : i32
    %c0_i32_1 = arith.constant 0 : i32
    return %c0_i32, %c0_i32_0 : i32, i32
  }
  func.func @transform_3(%arg0: i32) -> (i32, i32) {
    %c0_i32 = arith.constant 0 : i32
    %c0_i32_0 = arith.constant 0 : i32
    return %arg0, %c0_i32 : i32, i32
  }
  func.func @transform_4(%arg0: i32) -> (i32, i32) {
    %c0_i32 = arith.constant 0 : i32
    %c0_i32_0 = arith.constant 0 : i32
    return %arg0, %c0_i32 : i32, i32
  }
}

</mosaic_0001>

<llo_original>
// kernel: tpu_custom_call.1
$region0: #{tpu_custom_call.1}
  #allocation0 [shape = 'u32[]', space=smem, size = 0x4, offset = 0x4, fixed_abs, tag = 'smem constant byte address 0x4 - core index']
  #allocation1 [shape = 'u32[144,128]{1,0:T(1,128)}', space=vmem, size = 0x12000, scoped, tag = 'internal scratch']
  #allocation2 [shape = 'f32[1,1]{1,0:T(1,128)S(6)}', space=smem, size = 0x200, scoped, tag = 'scoped memory for tpu_custom_call.1']
  %s0 = inlined_call_operand.hbm [shape: f32[2,8,32], index: 0, kind: input, shape index: {}]
  %s1 = inlined_call_operand.vmem [shape: f32[1,32], index: 1, kind: input, shape index: {}]
  %s2 = inlined_call_operand.<no memory space> [shape: f32[1,1], index: 2, kind: input, shape index: {}]
  %s3 = inlined_call_operand.hbm [shape: f32[2,64], index: 3, kind: output, shape index: {0}]
  %s4 = inlined_call_operand.hbm [shape: f32[2,8], index: 4, kind: output, shape index: {1}]
  %5 = xla_tuple %s3, %s4
  %s6 = sld [smem:[#allocation0]]
  $region34: #{tpu_custom_call.1} parent=0
    _
  %s8 = ssub.s32 1, %s6
  %s9 = scalar_select 0, %s8, %s6
  %10 = sst [smem:[#allocation2]] %s2
  $region1: #{tpu_custom_call.1} parent=0
    #allocation3 [shape = 'u8[8192]{0}', space=vmem, size = 0x2000, scoped, tag = 'input window, operand 0, single buffered']
    #allocation4 [shape = 's32[1]{0}', space=sflag, size = 0x4, scoped, tag = 'scoped memory for tpu_custom_call.1']
    #allocation5 [shape = 's32[1]{0}', space=sflag, size = 0x4, scoped, tag = 'scoped memory for tpu_custom_call.1']
    #allocation6 [shape = 'u8[1024]{0}', space=vmem, size = 0x400, scoped, tag = 'output window, operand 0, single buffered']
    #allocation7 [shape = 'u8[1024]{0}', space=vmem, size = 0x400, scoped, tag = 'output window, operand 1, single buffered']
    #allocation8 [shape = 's32[1]{0}', space=sflag, size = 0x4, scoped, tag = 'scoped memory for tpu_custom_call.1']
    %11 = vsyncpa [#allocation4], 0
    %12 = vsyncpa [#allocation5], 0
    %13 = vsyncpa [#allocation8], 0
    // Predicated region
    $region2: #{tpu_custom_call.1} parent=1 // pred_check
      _
    $region3: #{tpu_custom_call.1} parent=1 // pred_check_branch
      %15 = sbr.rel (0) target = $region5
    $region4: #{tpu_custom_call.1} parent=1 // pred_region
      %s17 = ssub.s32 256, 256
      %18 = vsyncadd [#allocation4], %s17
      %s19 = sshll.u32 [#allocation3], 4
      %s20 = int_to_ptr.vmem [resolvable:$true] %s19
      %25 = dma.hbm_to_vmem [thread:$0]  %s0, 256, %s20, [#allocation4], 128, 128, 8
    $region5: #{tpu_custom_call.1} parent=1 // pred_fallthru
      _
    // Predicated region
    $region6: #{tpu_custom_call.1} parent=1 // pred_check
      _
    $region7: #{tpu_custom_call.1} parent=1 // pred_check_branch
      %27 = sbr.rel (0) target = $region9
    $region8: #{tpu_custom_call.1} parent=1 // pred_region
      _
    $region9: #{tpu_custom_call.1} parent=1 // pred_fallthru
      _
    // Predicated region
    $region10: #{tpu_custom_call.1} parent=1 // pred_check
      _
    $region11: #{tpu_custom_call.1} parent=1 // pred_check_branch
      %29 = sbr.rel (0) target = $region13
    $region12: #{tpu_custom_call.1} parent=1 // pred_region
      _
    $region13: #{tpu_custom_call.1} parent=1 // pred_fallthru
      _
    // Predicated region
    $region14: #{tpu_custom_call.1} parent=1 // pred_check
      _
    $region15: #{tpu_custom_call.1} parent=1 // pred_check_branch
      %31 = sbr.rel (0) target = $region17
    $region16: #{tpu_custom_call.1} parent=1 // pred_region
      %32 = dma.done [#allocation4], 256
    $region17: #{tpu_custom_call.1} parent=1 // pred_fallthru
      _
    %v33 = vld [vmem:[#allocation3] sm:$0xff]
    %v34 = vld [vmem:[#allocation3 + $0x8] sm:$0xff]
    %v35 = vld [vmem:[%s1] sm:$0x1]
    %s36 = sld [smem:[#allocation2]]
    %v38 = vlaneseq
    %v39 = vshrl.u32 %v38, 7
    %v40 = vsub.s32 0, %v39
    %v41 = vrot.slane %v35, %v40
    %v43 = vmul.f32 %v33, %v41
    %v44 = vmul.f32 %v34, %v41
    %vm45 = vcmask 261120
    %v46 = vsel %vm45, %v43, 0.0
    %47 = vadd.xlane.f32.xlu0 %v46
    %v48 = vpop.xlane.xlu0 %47
    %v49 = vsel %vm45, %v44, 0.0
    %50 = vadd.xlane.f32.xlu0 %v49
    %v51 = vpop.xlane.xlu0 %50
    %v52 = vstv %s36
    %v53 = vadd.f32 %v48, %v52
    %v54 = vadd.f32 %v51, %v52
    %v55 = vxor.u32 %v53, 2147483648
    %v56 = vxor.u32 %v54, 2147483648
    %v57 = vmul.f32 %v55, 1.442695
    %v58 = vpow.pop %v57
    %v59 = vmul.f32 %v56, 1.442695
    %v60 = vpow.pop %v59
    %v61 = vadd.f32 %v58, 1.0
    %v62 = vadd.f32 %v60, 1.0
    %v63 = vrcp.pop %v61
    %v64 = vmul.f32 1.0, %v63
    %v65 = vrcp.pop %v62
    %v66 = vmul.f32 1.0, %v65
    %v67 = vmul.f32 %v64, %v33
    %v68 = vmul.f32 %v66, %v34
    %v69 = vsel %vm45, %v67, 0.0
    %v70 = vrot.slane %v69, 4
    %v71 = vadd.f32 %v69, %v70
    %v72 = vrot.slane %v71, 2
    %v73 = vadd.f32 %v71, %v72
    %v74 = vrot.slane %v73, 1
    %v75 = vadd.f32 %v73, %v74
    %v76 = vsel %vm45, %v68, 0.0
    %v77 = vrot.slane %v76, 4
    %v78 = vadd.f32 %v76, %v77
    %v79 = vrot.slane %v78, 2
    %v80 = vadd.f32 %v78, %v79
    %v81 = vrot.slane %v80, 1
    %v82 = vadd.f32 %v80, %v81
    %v83 = vsel %vm45, %v33, -inf
    %v84 = vrot.slane %v83, 4
    %v85 = vmax.f32 %v83, %v84
    %v86 = vrot.slane %v85, 2
    %v87 = vmax.f32 %v85, %v86
    %v88 = vrot.slane %v87, 1
    %v89 = vmax.f32 %v87, %v88
    %v90 = vsel %vm45, %v34, -inf
    %v91 = vrot.slane %v90, 4
    %v92 = vmax.f32 %v90, %v91
    %v93 = vrot.slane %v92, 2
    %v94 = vmax.f32 %v92, %v93
    %v95 = vrot.slane %v94, 1
    %v96 = vmax.f32 %v94, %v95
    %vm99 = vcmask 1041409
    %v100 = vsel %vm99, %v82, %v75
    %v104 = vsel %vm99, %v96, %v89
    %105 = vrot.lane.b32.xlu0 %v104, 32
    %v106 = vpop.permute.xlu0 %105
    %v108 = vsel %vm45, %v100, %v106
    %vm109 = vcmask 517120
    %110 = vst.msk [vmem:[#allocation6] sm:$0x3] %vm109, %v108
    %v113 = vlaneseq
    %v114 = vand.u32 %v113, 127
    %v115 = vlaneseq
    %v116 = vshrl.u32 %v115, 7
    %v117 = vsub.s32 %v114, %v116
    %v118 = vrot.slane %v53, %v117
    %v119 = vlaneseq
    %v120 = vshrl.u32 %v119, 7
    %v121 = vsub.s32 %v114, %v120
    %v122 = vrot.slane %v54, %v121
    %v123 = vsel %vm99, %v122, %v118
    %vm125 = vcmask 58368
    %126 = vst.msk [vmem:[#allocation7] sm:$0x3] %vm125, %v123
    // Predicated region
    $region18: #{tpu_custom_call.1} parent=1 // pred_check
      _
    $region19: #{tpu_custom_call.1} parent=1 // pred_check_branch
      %128 = sbr.rel (0) target = $region21
    $region20: #{tpu_custom_call.1} parent=1 // pred_region
      %s130 = ssub.s32 32, 32
      %131 = vsyncadd [#allocation5], %s130
      %s133 = sshll.u32 [#allocation6], 4
      %s134 = int_to_ptr.vmem [resolvable:$true] %s133
      %136 = dma.vmem_to_hbm [thread:$0]  %s134, 32, %s3, [#allocation5]
    $region21: #{tpu_custom_call.1} parent=1 // pred_fallthru
      _
    // Predicated region
    $region22: #{tpu_custom_call.1} parent=1 // pred_check
      _
    $region23: #{tpu_custom_call.1} parent=1 // pred_check_branch
      %138 = sbr.rel (0) target = $region25
    $region24: #{tpu_custom_call.1} parent=1 // pred_region
      %s140 = ssub.s32 32, 32
      %141 = vsyncadd [#allocation8], %s140
      %s143 = sshll.u32 [#allocation7], 4
      %s144 = int_to_ptr.vmem [resolvable:$true] %s143
      %146 = dma.vmem_to_hbm [thread:$0]  %s144, 32, %s4, [#allocation8]
    $region25: #{tpu_custom_call.1} parent=1 // pred_fallthru
      _
    // Predicated region
    $region26: #{tpu_custom_call.1} parent=1 // pred_check
      _
    $region27: #{tpu_custom_call.1} parent=1 // pred_check_branch
      %148 = sbr.rel (0) target = $region29
    $region28: #{tpu_custom_call.1} parent=1 // pred_region
      %149 = dma.done [#allocation5], 32
    $region29: #{tpu_custom_call.1} parent=1 // pred_fallthru
      _
    // Predicated region
    $region30: #{tpu_custom_call.1} parent=1 // pred_check
      _
    $region31: #{tpu_custom_call.1} parent=1 // pred_check_branch
      %151 = sbr.rel (0) target = $region33
    $region32: #{tpu_custom_call.1} parent=1 // pred_region
      %152 = dma.done [#allocation8], 32
    $region33: #{tpu_custom_call.1} parent=1 // pred_fallthru
      _
    %153 = vsyncpa [#allocation4], 1
    %154 = vsyncpa [#allocation5], 1
    %155 = vsyncpa [#allocation8], 1

</llo_original>
